<compile_context>
chip_gen: v5e
topology: v5e:2x2
jax: 0.10.0
libtpu: 0.0.40
codegen_flags: <defaults>
</compile_context>

<pallas_src>
import functools

import jax
import jax.numpy as jnp
from jax.experimental import pallas as pl
from jax.experimental.pallas import tpu as pltpu


def _round_up(x: int, m: int) -> int:
    return ((x + m - 1) // m) * m


def d_forward_kernel(x_ref, w1_ref, b1_ref, w2_ref, b2_ref, w3_ref, b3_ref, o_ref):
    """One batch tile of the fused 3-layer MLP.

    x_ref:  (TILE_N, D_in)   f32   (cast to bf16 in-kernel for the MXU)
    wK_ref: (in, out)        bf16  (resident across the batch grid)
    bK_ref: (1, out)         f32   (resident)
    o_ref:  (TILE_N, OUT)    f32   (unpadded; masked stores, minimal HBM bytes)
    """
    # fc1 + ReLU  (bf16 MXU inputs, f32 accumulate; f32 VPU epilogue -> v5e-safe)
    x = x_ref[...].astype(jnp.bfloat16)
    h1 = jnp.dot(x, w1_ref[...], preferred_element_type=jnp.float32) + b1_ref[...]
    h1 = jnp.maximum(h1, 0.0)
    # TODO(synk): Dropout(p=0.2) in training mode would need pltpu.prng_seed +
    # pltpu.stateful_bernoulli; this kernel matches model.eval() (dropout = id).

    # fc2 + ReLU
    h2 = jnp.dot(h1.astype(jnp.bfloat16), w2_ref[...],
                 preferred_element_type=jnp.float32) + b2_ref[...]
    h2 = jnp.maximum(h2, 0.0)

    # fc3 + Sigmoid (EUP logistic path)
    z = jnp.dot(h2.astype(jnp.bfloat16), w3_ref[...],
                preferred_element_type=jnp.float32) + b3_ref[...]
    o_ref[...] = jax.nn.sigmoid(z)


def _choose_tile_n(n: int, requested: int) -> int:
    """Pick a batch tile: big to amortize ~0.35us/step overhead, multiple of 8,
    never larger than the array, and >= 2 grid steps when the batch allows
    (so the "parallel" axis can shard across v7x's two TensorCores)."""
    if n <= 8:
        return n  # single full-extent block (equal-to-full-dim satisfies (8,128) rule)
    requested = max(8, _round_up(requested, 8))
    tile = min(requested, _round_up(n, 8))
    if pl.cdiv(n, tile) < 2:
        tile = max(8, _round_up(pl.cdiv(n, 2), 8))
    return tile


def _vmem_estimate_bytes(tile_n: int, d_in: int, out_dim: int) -> int:
    """Rough per-core VMEM footprint: double-buffered streaming x/out, resident
    (but still double-buffered) bf16 weights + f32 biases, in-kernel activations."""
    io = 2 * tile_n * d_in * 4 + 2 * tile_n * out_dim * 4
    wb = 2 * ((2 * d_in * d_in + d_in * out_dim) * 2 + (2 * d_in + out_dim) * 4)
    act = tile_n * d_in * (4 + 4 + 2 + 2) + tile_n * out_dim * 4
    return io + wb + act


@functools.partial(jax.jit, static_argnames=("tile_n",))
def d_forward(x, w1, b1, w2, b2, w3, b3, *, tile_n=4096):
    """x: [N, input_dim] f32; wK passed as [in, out] (transposed vs PyTorch Linear)."""
    n, d_in = x.shape
    out_dim = w3.shape[1]

    tile = _choose_tile_n(n, tile_n)
    grid = (pl.cdiv(n, tile),)  # ragged last block allowed; OOB rows never stored

    # bf16 weights only (tiny, resident); x stays f32 and is cast in-kernel.
    w1b = w1.astype(jnp.bfloat16)
    w2b = w2.astype(jnp.bfloat16)
    w3b = w3.astype(jnp.bfloat16)

    # x / out move per grid step; weights & biases resident (constant index_map).
    x_spec = pl.BlockSpec((tile, d_in), lambda i: (i, 0))
    o_spec = pl.BlockSpec((tile, out_dim), lambda i: (i, 0))
    w1_spec = pl.BlockSpec((d_in, d_in), lambda i: (0, 0))
    w2_spec = pl.BlockSpec((d_in, d_in), lambda i: (0, 0))
    w3_spec = pl.BlockSpec((d_in, out_dim), lambda i: (0, 0))
    b1_spec = pl.BlockSpec((1, d_in), lambda i: (0, 0))
    b2_spec = pl.BlockSpec((1, d_in), lambda i: (0, 0))
    b3_spec = pl.BlockSpec((1, out_dim), lambda i: (0, 0))

    # Footprint-based VMEM budget (+ headroom), capped at the 32 MiB default —
    # never request v7x's entire 64 MiB physical VMEM.
    vmem_limit = min(32 * 1024 * 1024,
                     _round_up(_vmem_estimate_bytes(tile, d_in, out_dim)
                               + (4 << 20), 1 << 20))

    cost = pl.CostEstimate(
        flops=2 * n * d_in * (2 * d_in + out_dim),
        transcendentals=n * out_dim,
        bytes_accessed=(n * d_in * 4 + n * out_dim * 4
                        + (2 * d_in * d_in + d_in * out_dim) * 2
                        + (2 * d_in + out_dim) * 4),
    )

    out = pl.pallas_call(
        d_forward_kernel,
        out_shape=jax.ShapeDtypeStruct((n, out_dim), jnp.float32),
        grid=grid,
        in_specs=[x_spec, w1_spec, b1_spec, w2_spec, b2_spec, w3_spec, b3_spec],
        out_specs=o_spec,
        compiler_params=pltpu.CompilerParams(
            dimension_semantics=("parallel",),  # batch axis -> both TCs on v7x
            vmem_limit_bytes=vmem_limit,
        ),
        cost_estimate=cost,
    )(x, w1b, b1, w2b, b2, w3b, b3)

    return out


def init_params(key, input_dim, out_dim):
    """Matches D.initialize_weights(): Linear weights ~ N(0, 0.01), biases = 0.

    PyTorch Linear stores weight as [out, in] and computes x @ W.T + b; we store
    the transposed [in, out] layout so the kernel does a plain x @ W.
    """
    k1, k2, k3 = jax.random.split(key, 3)
    w1 = 0.01 * jax.random.normal(k1, (input_dim, input_dim), jnp.float32)
    w2 = 0.01 * jax.random.normal(k2, (input_dim, input_dim), jnp.float32)
    w3 = 0.01 * jax.random.normal(k3, (input_dim, out_dim), jnp.float32)
    b1 = jnp.zeros((1, input_dim), jnp.float32)
    b2 = jnp.zeros((1, input_dim), jnp.float32)
    b3 = jnp.zeros((1, out_dim), jnp.float32)
    return w1, b1, w2, b2, w3, b3


def _reference(x, w1, b1, w2, b2, w3, b3):
    """Pure-JAX reference with the same bf16 rounding of dot inputs."""
    def bf(a):
        return a.astype(jnp.bfloat16).astype(jnp.float32)
    hp = jax.lax.Precision.HIGHEST
    h1 = jnp.maximum(jnp.dot(bf(x), bf(w1), precision=hp) + b1, 0.0)
    h2 = jnp.maximum(jnp.dot(bf(h1), bf(w2), precision=hp) + b2, 0.0)
    return jax.nn.sigmoid(jnp.dot(bf(h2), bf(w3), precision=hp) + b3)


if __name__ == "__main__":
    input_dim = 32
    latent_dim = 32   # unused in forward (BatchNorm layers are never applied)
    out_dim = 16

    key = jax.random.PRNGKey(0)
    kx1, kx2, kp = jax.random.split(key, 3)
    w1, b1, w2, b2, w3, b3 = init_params(kp, input_dim, out_dim)

    # Case 1: batch divides the tile exactly -> 4 grid steps.
    x1 = jax.random.normal(kx1, (64, input_dim), jnp.float32)
    out1 = jax.block_until_ready(d_forward(x1, w1, b1, w2, b2, w3, b3, tile_n=16))
    ref1 = _reference(x1, w1, b1, w2, b2, w3, b3)
    assert out1.shape == (64, out_dim)
    assert jnp.allclose(out1, ref1, atol=1e-3, rtol=1e-3), (
        float(jnp.max(jnp.abs(out1 - ref1))))

    # Case 2: ragged batch with the default (large) tile -> auto-shrunk to 2 steps,
    # last block partially masked.
    x2 = jax.random.normal(kx2, (50, input_dim), jnp.float32)
    out2 = jax.block_until_ready(d_forward(x2, w1, b1, w2, b2, w3, b3))
    ref2 = _reference(x2, w1, b1, w2, b2, w3, b3)
    assert out2.shape == (50, out_dim)
    assert jnp.allclose(out2, ref2, atol=1e-3, rtol=1e-3), (
        float(jnp.max(jnp.abs(out2 - ref2))))

    print("KERNEL_OK")
</pallas_src>

<mosaic_0001>
module attributes {stable_mosaic.version = 11 : i64} {
  func.func @d_forward_kernel(%arg0: i32, %arg1: memref<16x32xf32, #tpu.memory_space<vmem>>, %arg2: memref<32x32xbf16, #tpu.memory_space<vmem>>, %arg3: memref<1x32xf32, #tpu.memory_space<vmem>>, %arg4: memref<32x32xbf16, #tpu.memory_space<vmem>>, %arg5: memref<1x32xf32, #tpu.memory_space<vmem>>, %arg6: memref<32x16xbf16, #tpu.memory_space<vmem>>, %arg7: memref<1x16xf32, #tpu.memory_space<vmem>>, %arg8: memref<16x16xf32, #tpu.memory_space<vmem>>) attributes {dimension_semantics = [#tpu.dimension_semantics<parallel>], iteration_bounds = array<i64: 4>, scalar_prefetch = 0 : i64, scratch_operands = 0 : i64, tpu.core_type = #tpu.core_type<tc>, window_params = [{transform_indices = @transform_0, window_bounds = array<i64: 16, 32>}, {pipeline_mode = #tpu.pipeline_mode<synchronous>, transform_indices = @transform_1, window_bounds = array<i64: 32, 32>}, {pipeline_mode = #tpu.pipeline_mode<synchronous>, transform_indices = @transform_2, window_bounds = array<i64: 1, 32>}, {pipeline_mode = #tpu.pipeline_mode<synchronous>, transform_indices = @transform_3, window_bounds = array<i64: 32, 32>}, {pipeline_mode = #tpu.pipeline_mode<synchronous>, transform_indices = @transform_4, window_bounds = array<i64: 1, 32>}, {pipeline_mode = #tpu.pipeline_mode<synchronous>, transform_indices = @transform_5, window_bounds = array<i64: 32, 16>}, {pipeline_mode = #tpu.pipeline_mode<synchronous>, transform_indices = @transform_6, window_bounds = array<i64: 1, 16>}, {transform_indices = @transform_7, window_bounds = array<i64: 16, 16>}]} {
    %c0 = arith.constant 0 : index
    %c0_0 = arith.constant 0 : index
    %0 = vector.load %arg1[%c0, %c0_0] : memref<16x32xf32, #tpu.memory_space<vmem>>, vector<16x32xf32>
    %1 = arith.truncf %0 : vector<16x32xf32> to vector<16x32xbf16>
    %c0_1 = arith.constant 0 : index
    %c0_2 = arith.constant 0 : index
    %2 = vector.load %arg2[%c0_1, %c0_2] : memref<32x32xbf16, #tpu.memory_space<vmem>>, vector<32x32xbf16>
    %cst = arith.constant dense<0.000000e+00> : vector<16x32xf32>
    %3 = tpu.matmul %1, %2, %cst {dimension_numbers = #tpu.dot_dimension_numbers<[1], [0], [0], [1], [0, 0, 1, 1], [], []>} : vector<16x32xbf16>, vector<32x32xbf16>, vector<16x32xf32> -> vector<16x32xf32>
    %c0_3 = arith.constant 0 : index
    %c0_4 = arith.constant 0 : index
    %4 = vector.load %arg3[%c0_3, %c0_4] : memref<1x32xf32, #tpu.memory_space<vmem>>, vector<1x32xf32>
    %5 = vector.broadcast %4 : vector<1x32xf32> to vector<16x32xf32>
    %6 = arith.addf %3, %5 : vector<16x32xf32>
    %cst_5 = arith.constant 0.000000e+00 : f32
    %7 = vector.broadcast %cst_5 : f32 to vector<16x32xf32>
    %8 = arith.maximumf %6, %7 : vector<16x32xf32>
    %9 = arith.truncf %8 : vector<16x32xf32> to vector<16x32xbf16>
    %c0_6 = arith.constant 0 : index
    %c0_7 = arith.constant 0 : index
    %10 = vector.load %arg4[%c0_6, %c0_7] : memref<32x32xbf16, #tpu.memory_space<vmem>>, vector<32x32xbf16>
    %cst_8 = arith.constant dense<0.000000e+00> : vector<16x32xf32>
    %11 = tpu.matmul %9, %10, %cst_8 {dimension_numbers = #tpu.dot_dimension_numbers<[1], [0], [0], [1], [0, 0, 1, 1], [], []>} : vector<16x32xbf16>, vector<32x32xbf16>, vector<16x32xf32> -> vector<16x32xf32>
    %c0_9 = arith.constant 0 : index
    %c0_10 = arith.constant 0 : index
    %12 = vector.load %arg5[%c0_9, %c0_10] : memref<1x32xf32, #tpu.memory_space<vmem>>, vector<1x32xf32>
    %13 = vector.broadcast %12 : vector<1x32xf32> to vector<16x32xf32>
    %14 = arith.addf %11, %13 : vector<16x32xf32>
    %cst_11 = arith.constant 0.000000e+00 : f32
    %15 = vector.broadcast %cst_11 : f32 to vector<16x32xf32>
    %16 = arith.maximumf %14, %15 : vector<16x32xf32>
    %17 = arith.truncf %16 : vector<16x32xf32> to vector<16x32xbf16>
    %c0_12 = arith.constant 0 : index
    %c0_13 = arith.constant 0 : index
    %18 = vector.load %arg6[%c0_12, %c0_13] : memref<32x16xbf16, #tpu.memory_space<vmem>>, vector<32x16xbf16>
    %cst_14 = arith.constant dense<0.000000e+00> : vector<16x16xf32>
    %19 = tpu.matmul %17, %18, %cst_14 {dimension_numbers = #tpu.dot_dimension_numbers<[1], [0], [0], [1], [0, 0, 1, 1], [], []>} : vector<16x32xbf16>, vector<32x16xbf16>, vector<16x16xf32> -> vector<16x16xf32>
    %c0_15 = arith.constant 0 : index
    %c0_16 = arith.constant 0 : index
    %20 = vector.load %arg7[%c0_15, %c0_16] : memref<1x16xf32, #tpu.memory_space<vmem>>, vector<1x16xf32>
    %21 = vector.broadcast %20 : vector<1x16xf32> to vector<16x16xf32>
    %22 = arith.addf %19, %21 : vector<16x16xf32>
    %23 = arith.negf %22 : vector<16x16xf32>
    %24 = math.exp %23 : vector<16x16xf32>
    %cst_17 = arith.constant 1.000000e+00 : f32
    %25 = vector.broadcast %cst_17 : f32 to vector<16x16xf32>
    %26 = arith.addf %25, %24 : vector<16x16xf32>
    %27 = arith.divf %25, %26 : vector<16x16xf32>
    %c0_18 = arith.constant 0 : index
    %c0_19 = arith.constant 0 : index
    %28 = vector.load %arg8[%c0_18, %c0_19] : memref<16x16xf32, #tpu.memory_space<vmem>>, vector<16x16xf32>
    tpu.vector_store %arg8[%c0_18, %c0_19], %27 {strides = array<i32>} : memref<16x16xf32, #tpu.memory_space<vmem>>, vector<16x16xf32>,
    return
  }
  func.func @transform_0(%arg0: i32) -> (i32, i32) {
    %c0_i32 = arith.constant 0 : i32
    %c0_i32_0 = arith.constant 0 : i32
    return %arg0, %c0_i32 : i32, i32
  }
  func.func @transform_1(%arg0: i32) -> (i32, i32) {
    %c0_i32 = arith.constant 0 : i32
    %c0_i32_0 = arith.constant 0 : i32
    %c0_i32_1 = arith.constant 0 : i32
    return %c0_i32, %c0_i32_0 : i32, i32
  }
  func.func @transform_2(%arg0: i32) -> (i32, i32) {
    %c0_i32 = arith.constant 0 : i32
    %c0_i32_0 = arith.constant 0 : i32
    %c0_i32_1 = arith.constant 0 : i32
    return %c0_i32, %c0_i32_0 : i32, i32
  }
  func.func @transform_3(%arg0: i32) -> (i32, i32) {
    %c0_i32 = arith.constant 0 : i32
    %c0_i32_0 = arith.constant 0 : i32
    %c0_i32_1 = arith.constant 0 : i32
    return %c0_i32, %c0_i32_0 : i32, i32
  }
  func.func @transform_4(%arg0: i32) -> (i32, i32) {
    %c0_i32 = arith.constant 0 : i32
    %c0_i32_0 = arith.constant 0 : i32
    %c0_i32_1 = arith.constant 0 : i32
    return %c0_i32, %c0_i32_0 : i32, i32
  }
  func.func @transform_5(%arg0: i32) -> (i32, i32) {
    %c0_i32 = arith.constant 0 : i32
    %c0_i32_0 = arith.constant 0 : i32
    %c0_i32_1 = arith.constant 0 : i32
    return %c0_i32, %c0_i32_0 : i32, i32
  }
  func.func @transform_6(%arg0: i32) -> (i32, i32) {
    %c0_i32 = arith.constant 0 : i32
    %c0_i32_0 = arith.constant 0 : i32
    %c0_i32_1 = arith.constant 0 : i32
    return %c0_i32, %c0_i32_0 : i32, i32
  }
  func.func @transform_7(%arg0: i32) -> (i32, i32) {
    %c0_i32 = arith.constant 0 : i32
    %c0_i32_0 = arith.constant 0 : i32
    return %arg0, %c0_i32 : i32, i32
  }
}

</mosaic_0001>

<llo_original>
// kernel: d_forward.1
$region0: #{d_forward.1}
  #allocation0 [shape = 'u32[]', space=smem, size = 0x4, offset = 0x4, fixed_abs, tag = 'smem constant byte address 0x4 - core index']
  #allocation1 [shape = 'u32[72,128]{1,0:T(1,128)}', space=vmem, size = 0x9000, scoped, tag = 'internal scratch']
  %s0 = inlined_call_operand.vmem [shape: f32[64,32], index: 0, kind: input, shape index: {}]
  %s1 = inlined_call_operand.vmem [shape: bf16[32,32], index: 1, kind: input, shape index: {}]
  %s2 = inlined_call_operand.vmem [shape: f32[1,32], index: 2, kind: input, shape index: {}]
  %s3 = inlined_call_operand.vmem [shape: bf16[32,32], index: 3, kind: input, shape index: {}]
  %s4 = inlined_call_operand.vmem [shape: f32[1,32], index: 4, kind: input, shape index: {}]
  %s5 = inlined_call_operand.vmem [shape: bf16[32,16], index: 5, kind: input, shape index: {}]
  %s6 = inlined_call_operand.vmem [shape: f32[1,16], index: 6, kind: input, shape index: {}]
  %s7 = inlined_call_operand.vmem [shape: f32[64,16], index: 7, kind: output, shape index: {}]
  %s8 = sld [smem:[#allocation0]]
  $region61: #{d_forward.1} parent=0
    _
  %s10 = ssub.s32 1, %s8
  %s11 = scalar_select 0, %s10, %s8
  loop: start=0, step=1, limit=6
  $region2: #{d_forward.1} parent=0 // loop_pre_header
    _
  $region3: #{d_forward.1} parent=0 // loop_header
    %s13 = sphi 0, %s17
    %p14 = scmp.ge.s32.totalorder %s13, 6
    %s23 = sphi 0, %s25
    %s26 = sphi 0, %s23
    %s27 = sphi 0, %s26
    %s43 = sphi 0, %s27
    %s47 = sphi 0, %s47
    %s49 = sphi 0, %s47
    %s50 = sphi 0, %s49
    %s64 = sphi 0, %s50
    %s68 = sphi 0, %s68
    %s70 = sphi 0, %s68
    %s71 = sphi 0, %s70
    %s85 = sphi 0, %s71
    %s89 = sphi 0, %s89
    %s91 = sphi 0, %s89
    %s92 = sphi 0, %s91
    %s106 = sphi 0, %s92
    %s110 = sphi 0, %s110
    %s112 = sphi 0, %s110
    %s113 = sphi 0, %s112
    %s127 = sphi 0, %s113
    %s131 = sphi 0, %s131
    %s133 = sphi 0, %s131
    %s134 = sphi 0, %s133
    %s148 = sphi 0, %s134
    %s152 = sphi 0, %s152
    %s154 = sphi 0, %s152
    %s155 = sphi 0, %s154
    %s169 = sphi 0, %s155
    %s175 = sphi 0, %s177
    %s178 = sphi 0, %s175
    %s179 = sphi 0, %s178
    %s195 = sphi 0, %s179
  $region4: #{d_forward.1} parent=0 // loop_header_branch
    %16 = sbr.rel (%p14) target = $region8
  $region5: #{d_forward.1} parent=0 // loop_body
    %s18 = ssub.s32 %s13, 1
    %s19 = ssub.s32 %s13, 2
    %s20 = sadd.s32 %s13, 1
    %s21 = ssub.s32 %s13, %s20
    %p22 = scmp.eq.s32.totalorder %s21, 0
    %s24 = sadd.s32 %s23, 1
    %s25 = scalar_select %p22, %s23, %s24
    %p28 = pneg %p22
    %p29 = scmp.eq.s32.totalorder %s13, 3
    %p30 = por %p28, %p29
    %p31 = scmp.ne.s32.totalorder %s23, %s26
    %p32 = scmp.eq.s32.totalorder %s13, 0
    %p33 = por %p31, %p32
    %p34 = scmp.ne.s32.totalorder %s23, %s26
    %p35 = scmp.eq.s32.totalorder %s18, 3
    %p36 = por %p34, %p35
    %p37 = scmp.ne.s32.totalorder %s26, %s27
    %p38 = scmp.eq.s32.totalorder %s18, 0
    %p39 = por %p37, %p38
    %p40 = scmp.ne.s32.totalorder %s26, %s27
    %p41 = scmp.eq.s32.totalorder %s19, 3
    %p42 = por %p40, %p41
    %p44 = scmp.ne.s32.totalorder %s27, %s43
    %p45 = scmp.eq.s32.totalorder %s19, 0
    %p46 = por %p44, %p45
    %s48 = sadd.s32 %s47, 1
    %p51 = scmp.eq.s32.totalorder %s13, 3
    %p52 = scmp.ne.s32.totalorder %s47, %s49
    %p53 = scmp.eq.s32.totalorder %s13, 0
    %p54 = por %p52, %p53
    %p55 = scmp.ne.s32.totalorder %s47, %s49
    %p56 = scmp.eq.s32.totalorder %s18, 3
    %p57 = por %p55, %p56
    %p58 = scmp.ne.s32.totalorder %s49, %s50
    %p59 = scmp.eq.s32.totalorder %s18, 0
    %p60 = por %p58, %p59
    %p61 = scmp.ne.s32.totalorder %s49, %s50
    %p62 = scmp.eq.s32.totalorder %s19, 3
    %p63 = por %p61, %p62
    %p65 = scmp.ne.s32.totalorder %s50, %s64
    %p66 = scmp.eq.s32.totalorder %s19, 0
    %p67 = por %p65, %p66
    %s69 = sadd.s32 %s68, 1
    %p72 = scmp.eq.s32.totalorder %s13, 3
    %p73 = scmp.ne.s32.totalorder %s68, %s70
    %p74 = scmp.eq.s32.totalorder %s13, 0
    %p75 = por %p73, %p74
    %p76 = scmp.ne.s32.totalorder %s68, %s70
    %p77 = scmp.eq.s32.totalorder %s18, 3
    %p78 = por %p76, %p77
    %p79 = scmp.ne.s32.totalorder %s70, %s71
    %p80 = scmp.eq.s32.totalorder %s18, 0
    %p81 = por %p79, %p80
    %p82 = scmp.ne.s32.totalorder %s70, %s71
    %p83 = scmp.eq.s32.totalorder %s19, 3
    %p84 = por %p82, %p83
    %p86 = scmp.ne.s32.totalorder %s71, %s85
    %p87 = scmp.eq.s32.totalorder %s19, 0
    %p88 = por %p86, %p87
    %s90 = sadd.s32 %s89, 1
    %p93 = scmp.eq.s32.totalorder %s13, 3
    %p94 = scmp.ne.s32.totalorder %s89, %s91
    %p95 = scmp.eq.s32.totalorder %s13, 0
    %p96 = por %p94, %p95
    %p97 = scmp.ne.s32.totalorder %s89, %s91
    %p98 = scmp.eq.s32.totalorder %s18, 3
    %p99 = por %p97, %p98
    %p100 = scmp.ne.s32.totalorder %s91, %s92
    %p101 = scmp.eq.s32.totalorder %s18, 0
    %p102 = por %p100, %p101
    %p103 = scmp.ne.s32.totalorder %s91, %s92
    %p104 = scmp.eq.s32.totalorder %s19, 3
    %p105 = por %p103, %p104
    %p107 = scmp.ne.s32.totalorder %s92, %s106
    %p108 = scmp.eq.s32.totalorder %s19, 0
    %p109 = por %p107, %p108
    %s111 = sadd.s32 %s110, 1
    %p114 = scmp.eq.s32.totalorder %s13, 3
    %p115 = scmp.ne.s32.totalorder %s110, %s112
    %p116 = scmp.eq.s32.totalorder %s13, 0
    %p117 = por %p115, %p116
    %p118 = scmp.ne.s32.totalorder %s110, %s112
    %p119 = scmp.eq.s32.totalorder %s18, 3
    %p120 = por %p118, %p119
    %p121 = scmp.ne.s32.totalorder %s112, %s113
    %p122 = scmp.eq.s32.totalorder %s18, 0
    %p123 = por %p121, %p122
    %p124 = scmp.ne.s32.totalorder %s112, %s113
    %p125 = scmp.eq.s32.totalorder %s19, 3
    %p126 = por %p124, %p125
    %p128 = scmp.ne.s32.totalorder %s113, %s127
    %p129 = scmp.eq.s32.totalorder %s19, 0
    %p130 = por %p128, %p129
    %s132 = sadd.s32 %s131, 1
    %p135 = scmp.eq.s32.totalorder %s13, 3
    %p136 = scmp.ne.s32.totalorder %s131, %s133
    %p137 = scmp.eq.s32.totalorder %s13, 0
    %p138 = por %p136, %p137
    %p139 = scmp.ne.s32.totalorder %s131, %s133
    %p140 = scmp.eq.s32.totalorder %s18, 3
    %p141 = por %p139, %p140
    %p142 = scmp.ne.s32.totalorder %s133, %s134
    %p143 = scmp.eq.s32.totalorder %s18, 0
    %p144 = por %p142, %p143
    %p145 = scmp.ne.s32.totalorder %s133, %s134
    %p146 = scmp.eq.s32.totalorder %s19, 3
    %p147 = por %p145, %p146
    %p149 = scmp.ne.s32.totalorder %s134, %s148
    %p150 = scmp.eq.s32.totalorder %s19, 0
    %p151 = por %p149, %p150
    %s153 = sadd.s32 %s152, 1
    %p156 = scmp.eq.s32.totalorder %s13, 3
    %p157 = scmp.ne.s32.totalorder %s152, %s154
    %p158 = scmp.eq.s32.totalorder %s13, 0
    %p159 = por %p157, %p158
    %p160 = scmp.ne.s32.totalorder %s152, %s154
    %p161 = scmp.eq.s32.totalorder %s18, 3
    %p162 = por %p160, %p161
    %p163 = scmp.ne.s32.totalorder %s154, %s155
    %p164 = scmp.eq.s32.totalorder %s18, 0
    %p165 = por %p163, %p164
    %p166 = scmp.ne.s32.totalorder %s154, %s155
    %p167 = scmp.eq.s32.totalorder %s19, 3
    %p168 = por %p166, %p167
    %p170 = scmp.ne.s32.totalorder %s155, %s169
    %p171 = scmp.eq.s32.totalorder %s19, 0
    %p172 = por %p170, %p171
    %s173 = ssub.s32 %s13, %s20
    %p174 = scmp.eq.s32.totalorder %s173, 0
    %s176 = sadd.s32 %s175, 1
    %s177 = scalar_select %p174, %s175, %s176
    %p180 = pneg %p174
    %p181 = scmp.eq.s32.totalorder %s13, 3
    %p182 = por %p180, %p181
    %p183 = scmp.ne.s32.totalorder %s175, %s178
    %p184 = scmp.eq.s32.totalorder %s13, 0
    %p185 = por %p183, %p184
    %p186 = scmp.ne.s32.totalorder %s175, %s178
    %p187 = scmp.eq.s32.totalorder %s18, 3
    %p188 = por %p186, %p187
    %p189 = scmp.ne.s32.totalorder %s178, %s179
    %p190 = scmp.eq.s32.totalorder %s18, 0
    %p191 = por %p189, %p190
    %p192 = scmp.ne.s32.totalorder %s178, %s179
    %p193 = scmp.eq.s32.totalorder %s19, 3
    %p194 = por %p192, %p193
    %p196 = scmp.ne.s32.totalorder %s179, %s195
    %p197 = scmp.eq.s32.totalorder %s19, 0
    %p198 = por %p196, %p197
    %p199 = scmp.le.s32.totalorder 1, %s13
    %p200 = scmp.lt.s32.totalorder %s13, 5
    %p201 = pnand %p199, %p200
    %p202 = pneg %p201
    // Predicated region
    $region9: #{d_forward.1} parent=5 // pred_check
      _
    $region10: #{d_forward.1} parent=5 // pred_check_branch
      %204 = sbr.rel (%p201) target = $region12
    $region11: #{d_forward.1} parent=5 // pred_region
      %s205 = ssub.s32 %s13, 1
      // Predicated region
      $region13: #{d_forward.1} parent=11 // pred_check
        %p206 = pneg %p60
      $region14: #{d_forward.1} parent=11 // pred_check_branch
        %208 = sbr.rel (%p206) target = $region16
      $region15: #{d_forward.1} parent=11 // pred_region
        _
      $region16: #{d_forward.1} parent=11 // pred_fallthru
        _
      // Predicated region
      $region17: #{d_forward.1} parent=11 // pred_check
        %p209 = pneg %p81
      $region18: #{d_forward.1} parent=11 // pred_check_branch
        %211 = sbr.rel (%p209) target = $region20
      $region19: #{d_forward.1} parent=11 // pred_region
        _
      $region20: #{d_forward.1} parent=11 // pred_fallthru
        _
      // Predicated region
      $region21: #{d_forward.1} parent=11 // pred_check
        %p212 = pneg %p102
      $region22: #{d_forward.1} parent=11 // pred_check_branch
        %214 = sbr.rel (%p212) target = $region24
      $region23: #{d_forward.1} parent=11 // pred_region
        _
      $region24: #{d_forward.1} parent=11 // pred_fallthru
        _
      // Predicated region
      $region25: #{d_forward.1} parent=11 // pred_check
        %p215 = pneg %p123
      $region26: #{d_forward.1} parent=11 // pred_check_branch
        %217 = sbr.rel (%p215) target = $region28
      $region27: #{d_forward.1} parent=11 // pred_region
        _
      $region28: #{d_forward.1} parent=11 // pred_fallthru
        _
      // Predicated region
      $region29: #{d_forward.1} parent=11 // pred_check
        %p218 = pneg %p144
      $region30: #{d_forward.1} parent=11 // pred_check_branch
        %220 = sbr.rel (%p218) target = $region32
      $region31: #{d_forward.1} parent=11 // pred_region
        _
      $region32: #{d_forward.1} parent=11 // pred_fallthru
        _
      // Predicated region
      $region33: #{d_forward.1} parent=11 // pred_check
        %p221 = pneg %p165
      $region34: #{d_forward.1} parent=11 // pred_check_branch
        %223 = sbr.rel (%p221) target = $region36
      $region35: #{d_forward.1} parent=11 // pred_region
        _
      $region36: #{d_forward.1} parent=11 // pred_fallthru
        _
    $region12: #{d_forward.1} parent=5 // pred_fallthru
      _
    %p224 = scmp.lt.s32.totalorder %s13, 4
    // Predicated region
    $region37: #{d_forward.1} parent=5 // pred_check
      %p225 = pneg %p224
    $region38: #{d_forward.1} parent=5 // pred_check_branch
      %227 = sbr.rel (%p225) target = $region40
    $region39: #{d_forward.1} parent=5 // pred_region
      // Predicated region
      $region41: #{d_forward.1} parent=39 // pred_check
        %p228 = pneg %p33
      $region42: #{d_forward.1} parent=39 // pred_check_branch
        %230 = sbr.rel (%p228) target = $region44
      $region43: #{d_forward.1} parent=39 // pred_region
        %s231 = smul.u32 2, %s13
        %p232 = scmp.lt.s32.totalorder %s231, 7
        %s233 = scalar_select %p232, %s231, 7
        %s234 = smul.addr %s233, 8
        %s235 = scalar_lea.vmem %s0, %s234
        %s236 = smul.u32 2, %s13
      $region44: #{d_forward.1} parent=39 // pred_fallthru
        _
    $region40: #{d_forward.1} parent=5 // pred_fallthru
      _
    %p237 = scmp.le.s32.totalorder 1, %s13
    %p238 = scmp.lt.s32.totalorder %s13, 5
    %p239 = pnand %p237, %p238
    %p240 = pneg %p239
    // Predicated region
    $region45: #{d_forward.1} parent=5 // pred_check
      _
    $region46: #{d_forward.1} parent=5 // pred_check_branch
      %242 = sbr.rel (%p239) target = $region48
    $region47: #{d_forward.1} parent=5 // pred_region
      %s243 = ssub.s32 %s13, 1
      %s244 = smul.u32 2, %s18
      %p245 = scmp.lt.s32.totalorder %s244, 7
      %s246 = scalar_select %p245, %s244, 7
      %s247 = smul.addr %s246, 8
      %s248 = scalar_lea.vmem %s0, %s247
      %p249 = pneg %p39
      %p250 = pneg %p36
      %p251 = pneg %p60
      %p252 = pneg %p57
      %p253 = pneg %p81
      %p254 = pneg %p78
      %p255 = pneg %p102
      %p256 = pneg %p99
      %p257 = pneg %p123
      %p258 = pneg %p120
      %p259 = pneg %p144
      %p260 = pneg %p141
      %p261 = pneg %p165
      %p262 = pneg %p162
      %p263 = pneg %p191
      %p264 = pneg %p188
      %s265 = smul.u32 2, %s18
      %p266 = scmp.lt.s32.totalorder %s265, 7
      %s267 = scalar_select %p266, %s265, 7
      %s268 = smul.addr %s267, 8
      %s269 = scalar_lea.vmem %s7, %s268
      %s270 = smul.u32 2, %s18
      %p271 = scmp.lt.s32.totalorder %s270, 7
      %s272 = scalar_select %p271, %s270, 7
      %s273 = smul.addr %s272, 8
      %s274 = scalar_lea.vmem %s0, %s273
      %s275 = smul.u32 2, %s18
      %s276 = smul.u32 2, %s18
      %p277 = scmp.lt.s32.totalorder %s276, 7
      %s278 = scalar_select %p277, %s276, 7
      %s279 = smul.addr %s278, 8
      %s280 = scalar_lea.vmem %s7, %s279
      %s281 = smul.u32 2, %s18
      %v283 = vld [vmem:[%s274] sm:$0xff]
      %v284 = vld [vmem:[%s274 + $0x8] sm:$0xff]
      %v285 = vpack.c.bf16 %v284, %v283
      %v286 = vld [vmem:[%s1] sm:$0xf]
      %v287 = vld [vmem:[%s1 + $0x4] sm:$0xf]
      %v288 = vld [vmem:[%s1 + $0x8] sm:$0xf]
      %v289 = vld [vmem:[%s1 + $0xc] sm:$0xf]
      %v290 = vld [vmem:[%s2] sm:$0x1]
      %v292 = vperm.slane %v290, 0
      %v298 = vunpack.c.l.b16 %v286
      %v299 = vunpack.c.l.b16 %v287
      %v300 = vunpack.c.l.b16 %v288
      %v301 = vunpack.c.l.b16 %v289
      %v302 = vpack.c.b16 %v299, %v298
      %v303 = vpack.c.b16 %v301, %v300
      %vm306 = vcmask 261120
      %v308 = vsel %vm306, %v285, 0
      %310 = vmatpush.bf16.msra.mxu0 0
      %311 = vmatpush.bf16.msra.mxu0 0
      %312 = vmatpush.bf16.msra.mxu0 0
      %313 = vmatpush.bf16.msra.mxu0 0
      %314 = vmatpush.bf16.msra.mxu0 0
      %315 = vmatpush.bf16.msra.mxu0 0
      %316 = vmatpush.bf16.msra.mxu0 %v303
      %317 = vmatpush.bf16.msra.mxu0 %v302
      %318 = vmatmul.bf16.gmra.mxu0 %v308
      %v319 = vpop.f32.mrf.mxu0
      %v320 = vadd.f32 %v292, %v319
      %v321 = vpop.f32.mrf.mxu0
      %v322 = vadd.f32 %v292, %v321
      %323 = vdwg.mxu0
      %v324 = vmax.f32 %v320, 0.0
      %v325 = vmax.f32 %v322, 0.0
      %v326 = vpack.c.bf16 %v325, %v324
      %v327 = vld [vmem:[%s3] sm:$0xf]
      %v328 = vld [vmem:[%s3 + $0x4] sm:$0xf]
      %v329 = vld [vmem:[%s3 + $0x8] sm:$0xf]
      %v330 = vld [vmem:[%s3 + $0xc] sm:$0xf]
      %v331 = vld [vmem:[%s4] sm:$0x1]
      %v333 = vperm.slane %v331, 0
      %v339 = vunpack.c.l.b16 %v327
      %v340 = vunpack.c.l.b16 %v328
      %v341 = vunpack.c.l.b16 %v329
      %v342 = vunpack.c.l.b16 %v330
      %v343 = vpack.c.b16 %v340, %v339
      %v344 = vpack.c.b16 %v342, %v341
      %v348 = vsel %vm306, %v326, 0
      %350 = vmatpush.bf16.msra.mxu0 0
      %351 = vmatpush.bf16.msra.mxu0 0
      %352 = vmatpush.bf16.msra.mxu0 0
      %353 = vmatpush.bf16.msra.mxu0 0
      %354 = vmatpush.bf16.msra.mxu0 0
      %355 = vmatpush.bf16.msra.mxu0 0
      %356 = vmatpush.bf16.msra.mxu0 %v344
      %357 = vmatpush.bf16.msra.mxu0 %v343
      %358 = vmatmul.bf16.gmra.mxu0 %v348
      %v359 = vpop.f32.mrf.mxu0
      %v360 = vadd.f32 %v333, %v359
      %v361 = vpop.f32.mrf.mxu0
      %v362 = vadd.f32 %v333, %v361
      %363 = vdwg.mxu0
      %v364 = vmax.f32 %v360, 0.0
      %v365 = vmax.f32 %v362, 0.0
      %v366 = vpack.c.bf16 %v365, %v364
      %v367 = vld [vmem:[%s5] sm:$0xf]
      %v368 = vld [vmem:[%s5 + $0x4] sm:$0xf]
      %v369 = vld [vmem:[%s5 + $0x8] sm:$0xf]
      %v370 = vld [vmem:[%s5 + $0xc] sm:$0xf]
      %v371 = vld [vmem:[%s6] sm:$0x1]
      %v373 = vperm.slane %v371, 0
      %v379 = vunpack.c.l.b16 %v367
      %v380 = vunpack.c.l.b16 %v368
      %v381 = vunpack.c.l.b16 %v369
      %v382 = vunpack.c.l.b16 %v370
      %v383 = vpack.c.b16 %v380, %v379
      %v384 = vpack.c.b16 %v382, %v381
      %v388 = vsel %vm306, %v366, 0
      %390 = vmatpush.bf16.msra.mxu0 0
      %391 = vmatpush.bf16.msra.mxu0 0
      %392 = vmatpush.bf16.msra.mxu0 0
      %393 = vmatpush.bf16.msra.mxu0 0
      %394 = vmatpush.bf16.msra.mxu0 0
      %395 = vmatpush.bf16.msra.mxu0 0
      %396 = vmatpush.bf16.msra.mxu0 %v384
      %397 = vmatpush.bf16.msra.mxu0 %v383
      %398 = vmatmul.bf16.gmra.mxu0 %v388
      %v399 = vpop.f32.mrf.mxu0
      %v400 = vadd.f32 %v373, %v399
      %v401 = vpop.f32.mrf.mxu0
      %v402 = vadd.f32 %v373, %v401
      %403 = vdwg.mxu0
      %v404 = vxor.u32 %v400, 2147483648
      %v405 = vxor.u32 %v402, 2147483648
      %v406 = vmul.f32 %v404, 1.442695
      %v407 = vpow.pop %v406
      %v408 = vmul.f32 %v405, 1.442695
      %v409 = vpow.pop %v408
      %v410 = vadd.f32 %v407, 1.0
      %v411 = vadd.f32 %v409, 1.0
      %v412 = vrcp.pop %v410
      %v413 = vmul.f32 %v410, %v412
      %v414 = vsub.f32 1.0, %v413
      %v415 = vmul.f32 %v412, %v414
      %v416 = vadd.f32 %v412, %v415
      %vm417 = vweird.f32 %v410
      %vm418 = vweird.f32 %v412
      %vm419 = vmor %vm417, %vm418
      %v420 = vsel %vm419, %v412, %v416
      %v421 = vand.u32 2147483647, %v410
      %vm422 = vcmp.eq.f32.partialorder %v421, 8.507059e+37
      %v423 = vand.u32 %v410, 2147483648
      %v424 = vor.u32 1.1754944e-38, %v423
      %v425 = vsel %vm422, %v424, %v420
      %v426 = vmul.f32 1.0, %v425
      %v427 = vrcp.pop %v411
      %v428 = vmul.f32 %v411, %v427
      %v429 = vsub.f32 1.0, %v428
      %v430 = vmul.f32 %v427, %v429
      %v431 = vadd.f32 %v427, %v430
      %vm432 = vweird.f32 %v411
      %vm433 = vweird.f32 %v427
      %vm434 = vmor %vm432, %vm433
      %v435 = vsel %vm434, %v427, %v431
      %v436 = vand.u32 2147483647, %v411
      %vm437 = vcmp.eq.f32.partialorder %v436, 8.507059e+37
      %v438 = vand.u32 %v411, 2147483648
      %v439 = vor.u32 1.1754944e-38, %v438
      %v440 = vsel %vm437, %v439, %v435
      %v441 = vmul.f32 1.0, %v440
      %vm442 = vcmask 130048
      %443 = vst.msk [vmem:[%s280] sm:$0xff] %vm442, %v426
      %444 = vst.msk [vmem:[%s280 + $0x8] sm:$0xff] %vm442, %v441
      %s445 = smul.u32 2, %s18
      %p446 = scmp.lt.s32.totalorder %s445, 7
      %s447 = scalar_select %p446, %s445, 7
      %s448 = smul.addr %s447, 8
      %s449 = scalar_lea.vmem %s7, %s448
      // Predicated region
      $region49: #{d_forward.1} parent=47 // pred_check
        %p450 = pneg %p188
      $region50: #{d_forward.1} parent=47 // pred_check_branch
        %452 = sbr.rel (%p450) target = $region52
      $region51: #{d_forward.1} parent=47 // pred_region
        %s453 = smul.u32 2, %s18
      $region52: #{d_forward.1} parent=47 // pred_fallthru
        _
    $region48: #{d_forward.1} parent=5 // pred_fallthru
      _
    %p454 = scmp.le.s32.totalorder 2, %s13
    // Predicated region
    $region53: #{d_forward.1} parent=5 // pred_check
      %p455 = pneg %p454
    $region54: #{d_forward.1} parent=5 // pred_check_branch
      %457 = sbr.rel (%p455) target = $region56
    $region55: #{d_forward.1} parent=5 // pred_region
      %s458 = ssub.s32 %s13, 2
      // Predicated region
      $region57: #{d_forward.1} parent=55 // pred_check
        %p459 = pneg %p194
      $region58: #{d_forward.1} parent=55 // pred_check_branch
        %461 = sbr.rel (%p459) target = $region60
      $region59: #{d_forward.1} parent=55 // pred_region
        %s462 = smul.u32 2, %s19
        %p463 = scmp.lt.s32.totalorder %s462, 7
        %s464 = scalar_select %p463, %s462, 7
        %s465 = smul.addr %s464, 8
        %s466 = scalar_lea.vmem %s7, %s465
      $region60: #{d_forward.1} parent=55 // pred_fallthru
        _
    $region56: #{d_forward.1} parent=5 // pred_fallthru
      _
  $region6: #{d_forward.1} parent=0 // loop_footer
    %s17 = sadd.s32 1, %s13
  $region7: #{d_forward.1} parent=0 // loop_footer_branch
    %12 = sbr.rel target = $region3
  $region8: #{d_forward.1} parent=0 // loop_exit
    _

</llo_original>
